<compile_context>
chip_gen: v5e
topology: v5e:2x2
jax: 0.10.0
libtpu: 0.0.40
codegen_flags: <defaults>
</compile_context>

<pallas_src>
import functools

import jax
import jax.numpy as jnp
from jax.experimental import pallas as pl
from jax.experimental.pallas import tpu as pltpu


CAT_C = 64          # cat_channel
TARGET_ROWS = 512   # ~matmul-M rows per grid step (big tiles per review; still only a few
                    # MB per step since conv taps are in-kernel -> safe on v7x 64 MiB VMEM)


# ----------------------------------------------------------------------------
# Row-block (halo) packing glue.
#
# A 3x3 SAME conv needs a 1-pixel spatial halo.  We zero-pad each image, split it into
# `nb` equal row blocks of `tile_h` output rows, and store each block's padded rows
# flattened as a 2-D (rows, C) slab:
#     rows_in  = (tile_h + 3) * (W + 2)     (tile_h + 2 halo rows + 1 slack row)
#     rows_out = tile_h * (W + 2)           (2 garbage columns per row, sliced off later)
# Inside the kernel, conv tap (kh, kw) is then the contiguous row slice
#     x[kh*(W+2)+kw : kh*(W+2)+kw + rows_out, :] @ W_tap
# i.e. 9 accumulating matmuls into one f32 accumulator — no im2col anywhere.
# ----------------------------------------------------------------------------
def _choose_tile_h(H, W, target_rows=TARGET_ROWS):
    wp = W + 2
    tile_h = max(1, min(H, target_rows // wp))
    nb = -(-H // tile_h)           # ceil
    tile_h = -(-H // nb)           # rebalance -> minimal row padding waste
    return tile_h, nb


def _pad_and_block(x, tile_h, nb):
    """(B, H, W, C) -> (B*nb, (tile_h+3)*(W+2), C) bf16 halo row-blocks."""
    B, H, W, C = x.shape
    wp = W + 2
    h_pad = tile_h * nb
    # 1 top halo row; bottom: 1 halo row + (h_pad - H) fill rows + 1 slack row.
    xp = jnp.pad(x.astype(jnp.bfloat16),
                 ((0, 0), (1, (h_pad - H) + 2), (1, 1), (0, 0)))     # (B, h_pad+3, wp, C)
    blocks = [xp[:, j * tile_h: j * tile_h + tile_h + 3] for j in range(nb)]
    xb = jnp.stack(blocks, axis=1)                                    # (B, nb, tile_h+3, wp, C)
    return xb.reshape(B * nb, (tile_h + 3) * wp, C)


def _unblock(y, B, nb, tile_h, H, W):
    """(B*nb, tile_h*(W+2), C) -> (B, H, W, C); drops halo-padding garbage columns/rows."""
    wp = W + 2
    C = y.shape[-1]
    y = y.reshape(B, nb, tile_h, wp, C)[:, :, :, :W, :]
    return y.reshape(B, nb * tile_h, W, C)[:, :H]


# ----------------------------------------------------------------------------
# Pallas kernel 1: fused "5 branch 3x3 convs + channel concat" for one fusion level.
# refs = (x0, w0, b0, ..., x4, w4, b4, o_ref)
#   x_i: ((tile_h+3)*wp, Cin_i)  bf16 halo row-block
#   w_i: (9*Cin_i, cat_c)        bf16 (BN scale folded), tap-major (kh, kw, cin) rows
#   b_i: (1, cat_c)              f32 folded BN bias
#   o  : (tile_h*wp, 5*cat_c)    bf16 — single lane-dense concat store
# ----------------------------------------------------------------------------
def _branch_cat_kernel(*refs, n_branch, cat_c, wp, tile_h, cins):
    o_ref = refs[3 * n_branch]
    m = tile_h * wp
    outs = []
    for i in range(n_branch):
        x_ref, w_ref, b_ref = refs[3 * i], refs[3 * i + 1], refs[3 * i + 2]
        cin = cins[i]
        acc = jnp.zeros((m, cat_c), jnp.float32)
        for kh in range(3):
            for kw in range(3):
                t = kh * 3 + kw
                acc = acc + jnp.dot(
                    x_ref[pl.ds(kh * wp + kw, m), :],
                    w_ref[pl.ds(t * cin, cin), :],
                    preferred_element_type=jnp.float32)
        outs.append(jnp.maximum(acc + b_ref[...], 0.0))       # folded-BN bias + ReLU
    # Build the concat in registers, one lane-dense 320-wide store.
    o_ref[...] = jnp.concatenate(outs, axis=-1).astype(o_ref.dtype)


def fused_branch_cat(xs, ws, bs, *, cins, tile_h, wp, cat_c=CAT_C):
    n = len(xs)
    G = xs[0].shape[0]
    rows_in = (tile_h + 3) * wp
    rows_out = tile_h * wp

    in_specs, args = [], []
    flops = 0
    bytes_accessed = G * rows_out * n * cat_c * 2
    for x, w, b, cin in zip(xs, ws, bs, cins):
        in_specs += [
            pl.BlockSpec((None, rows_in, cin), lambda g: (g, 0, 0)),
            pl.BlockSpec((9 * cin, cat_c), lambda g: (0, 0)),
            pl.BlockSpec((1, cat_c), lambda g: (0, 0)),
        ]
        args += [x, w, b]
        flops += 2 * G * rows_out * 9 * cin * cat_c
        bytes_accessed += x.size * 2 + w.size * 2 + b.size * 4

    kernel = functools.partial(_branch_cat_kernel, n_branch=n, cat_c=cat_c,
                               wp=wp, tile_h=tile_h, cins=tuple(cins))
    return pl.pallas_call(
        kernel,
        out_shape=jax.ShapeDtypeStruct((G, rows_out, n * cat_c), jnp.bfloat16),
        grid=(G,),
        in_specs=in_specs,
        out_specs=pl.BlockSpec((None, rows_out, n * cat_c), lambda g: (g, 0, 0)),
        compiler_params=pltpu.CompilerParams(dimension_semantics=("parallel",)),
        cost_estimate=pl.CostEstimate(flops=int(flops), transcendentals=0,
                                      bytes_accessed=int(bytes_accessed)),
    )(*args)


# ----------------------------------------------------------------------------
# Pallas kernel 2: single wide 3x3 conv (the o* convs): 9-tap matmul + bias + ReLU.
# ----------------------------------------------------------------------------
def _conv_bias_relu_kernel(x_ref, w_ref, b_ref, o_ref, *, wp, tile_h, cin):
    m = tile_h * wp
    n_out = o_ref.shape[-1]
    acc = jnp.zeros((m, n_out), jnp.float32)
    for kh in range(3):
        for kw in range(3):
            t = kh * 3 + kw
            acc = acc + jnp.dot(x_ref[pl.ds(kh * wp + kw, m), :],
                                w_ref[pl.ds(t * cin, cin), :],
                                preferred_element_type=jnp.float32)
    o_ref[...] = jnp.maximum(acc + b_ref[...], 0.0).astype(o_ref.dtype)


def conv_bias_relu(x, w, b, *, cin, tile_h, wp, out_dtype=jnp.bfloat16):
    G = x.shape[0]
    n_out = w.shape[-1]
    rows_in = (tile_h + 3) * wp
    rows_out = tile_h * wp
    kernel = functools.partial(_conv_bias_relu_kernel, wp=wp, tile_h=tile_h, cin=cin)
    flops = 2 * G * rows_out * 9 * cin * n_out
    bytes_accessed = (x.size * 2 + w.size * 2 + b.size * 4
                      + G * rows_out * n_out * jnp.dtype(out_dtype).itemsize)
    return pl.pallas_call(
        kernel,
        out_shape=jax.ShapeDtypeStruct((G, rows_out, n_out), out_dtype),
        grid=(G,),
        in_specs=[pl.BlockSpec((None, rows_in, cin), lambda g: (g, 0, 0)),
                  pl.BlockSpec((9 * cin, n_out), lambda g: (0, 0)),
                  pl.BlockSpec((1, n_out), lambda g: (0, 0))],
        out_specs=pl.BlockSpec((None, rows_out, n_out), lambda g: (g, 0, 0)),
        compiler_params=pltpu.CompilerParams(dimension_semantics=("parallel",)),
        cost_estimate=pl.CostEstimate(flops=int(flops), transcendentals=0,
                                      bytes_accessed=int(bytes_accessed)),
    )(x, w, b)


def conv_bn_relu_pallas(x, w, b, out_dtype=jnp.bfloat16):
    """Standalone ConvBNAct on a full NHWC map (used by the self-check)."""
    B, H, W, C = x.shape
    tile_h, nb = _choose_tile_h(H, W)
    wp = W + 2
    xb = _pad_and_block(x, tile_h, nb)
    y = conv_bias_relu(xb, w, b, cin=C, tile_h=tile_h, wp=wp, out_dtype=out_dtype)
    return _unblock(y, B, nb, tile_h, H, W)


# ----------------------------------------------------------------------------
# Plain-JAX glue (fused by XLA): maxpool (ceil_mode), bilinear upsample.
# ----------------------------------------------------------------------------
def maxpool(x, k):
    B, H, W, C = x.shape
    Hc, Wc = -(-H // k), -(-W // k)
    ph, pw = Hc * k - H, Wc * k - W
    if ph or pw:  # ceil_mode=True: pad with -max so padded cells never win
        x = jnp.pad(x, ((0, 0), (0, ph), (0, pw), (0, 0)),
                    constant_values=float(jnp.finfo(x.dtype).min))
    return x.reshape(B, Hc, k, Wc, k, C).max(axis=(2, 4))


def upsample_bilinear(x, s):
    # Matches nn.Upsample(scale_factor=s, mode='bilinear', align_corners=False).
    B, H, W, C = x.shape
    return jax.image.resize(x, (B, H * s, W * s, C), method='bilinear')


# ----------------------------------------------------------------------------
# Parameter construction (deterministic, in-script).  Inference BN folded:
#   w' = w * gamma/sqrt(var+eps)  (per output channel),  bias = beta - mean*scale.
# Weights stored as (9*Cin, Cout) bf16, tap-major (kh, kw) then Cin rows.
# ----------------------------------------------------------------------------
def make_convbnact_params(key, cin, cout):
    k1, k2, k3 = jax.random.split(key, 3)
    fan_in = 3 * 3 * cin
    w = jax.random.normal(k1, (3, 3, cin, cout), jnp.float32) / jnp.sqrt(fan_in)
    gamma = 1.0 + 0.1 * jax.random.normal(k2, (cout,), jnp.float32)
    beta = 0.1 * jax.random.normal(k3, (cout,), jnp.float32)
    running_mean = jnp.zeros((cout,), jnp.float32)
    running_var = jnp.ones((cout,), jnp.float32)
    eps = 1e-5
    scale = gamma / jnp.sqrt(running_var + eps)
    bias = beta - running_mean * scale
    w_folded = (w * scale[None, None, None, :]).reshape(9 * cin, cout)
    # TODO(synk): if importing real PyTorch OIHW weights, transpose OIHW -> HWIO first.
    return w_folded.astype(jnp.bfloat16), bias.reshape(1, cout).astype(jnp.float32)


def make_fusion_params(key, cat_channel=CAT_C):
    C, C5 = cat_channel, 5 * cat_channel
    specs = {
        'f5_5_conv': (512, C), 'f4_5_conv': (512, C), 'f3_5_conv': (256, C),
        'f2_5_conv': (128, C), 'f1_5_conv': (64, C), 'o5': (C5, C5),
        'o5_4_conv': (C5, C), 'f4_4_conv': (512, C), 'f3_4_conv': (256, C),
        'f2_4_conv': (128, C), 'f1_4_conv': (64, C), 'o4': (C5, C5),
        'o5_3_conv': (C5, C), 'o4_3_conv': (C5, C), 'f3_3_conv': (256, C),
        'f2_3_conv': (128, C), 'f1_3_conv': (64, C), 'o3': (C5, C5),
        'o5_2_conv': (C5, C), 'o4_2_conv': (C5, C), 'o3_2_conv': (C5, C),
        'f2_2_conv': (128, C), 'f1_2_conv': (64, C), 'o2': (C5, C5),
        'o5_1_conv': (C5, C), 'o4_1_conv': (C5, C), 'o3_1_conv': (C5, C),
        'o2_1_conv': (C5, C), 'f1_1_conv': (64, C), 'o1': (C5, C5),
    }
    params = {}
    keys = jax.random.split(key, len(specs))
    for k, (name, (cin, cout)) in zip(keys, sorted(specs.items())):
        params[name] = make_convbnact_params(k, cin, cout)
    return params


# ----------------------------------------------------------------------------
# Forward pass (mirrors fusion.forward; activations in NHWC).
# ----------------------------------------------------------------------------
def fusion_forward(params, features_nhwc, cat_channel=CAT_C):
    feats = [f.astype(jnp.bfloat16) for f in features_nhwc]
    p1, p2, p3, p4, p5 = feats
    B = p1.shape[0]

    def level(branch_names, branch_inputs, o_name, out_dtype):
        _, H, W, _ = branch_inputs[0].shape
        tile_h, nb = _choose_tile_h(H, W)
        wp = W + 2
        cins = [x.shape[-1] for x in branch_inputs]
        xs = [_pad_and_block(x, tile_h, nb) for x in branch_inputs]
        ws = [params[n][0] for n in branch_names]
        bs = [params[n][1] for n in branch_names]
        # 5 branch convs + concat in one pallas_call -> (B*nb, tile_h*wp, 320) bf16
        cat = fused_branch_cat(xs, ws, bs, cins=cins, tile_h=tile_h, wp=wp,
                               cat_c=cat_channel)
        cat = _unblock(cat, B, nb, tile_h, H, W)                  # (B, H, W, 320) bf16
        wo, bo = params[o_name]
        xo = _pad_and_block(cat, tile_h, nb)
        o = conv_bias_relu(xo, wo, bo, cin=5 * cat_channel, tile_h=tile_h, wp=wp,
                           out_dtype=out_dtype)
        return _unblock(o, B, nb, tile_h, H, W)                   # (B, H, W, 320)

    o5 = level(['f5_5_conv', 'f4_5_conv', 'f3_5_conv', 'f2_5_conv', 'f1_5_conv'],
               [p5, maxpool(p4, 2), maxpool(p3, 4), maxpool(p2, 8), maxpool(p1, 16)],
               'o5', jnp.bfloat16)
    o4 = level(['o5_4_conv', 'f4_4_conv', 'f3_4_conv', 'f2_4_conv', 'f1_4_conv'],
               [upsample_bilinear(o5, 2), p4, maxpool(p3, 2), maxpool(p2, 4), maxpool(p1, 8)],
               'o4', jnp.bfloat16)
    o3 = level(['o5_3_conv', 'o4_3_conv', 'f3_3_conv', 'f2_3_conv', 'f1_3_conv'],
               [upsample_bilinear(o5, 4), upsample_bilinear(o4, 2), p3,
                maxpool(p2, 2), maxpool(p1, 4)],
               'o3', jnp.bfloat16)
    o2 = level(['o5_2_conv', 'o4_2_conv', 'o3_2_conv', 'f2_2_conv', 'f1_2_conv'],
               [upsample_bilinear(o5, 8), upsample_bilinear(o4, 4), upsample_bilinear(o3, 2),
                p2, maxpool(p1, 2)],
               'o2', jnp.bfloat16)
    o1 = level(['o5_1_conv', 'o4_1_conv', 'o3_1_conv', 'o2_1_conv', 'f1_1_conv'],
               [upsample_bilinear(o5, 16), upsample_bilinear(o4, 8), upsample_bilinear(o3, 4),
                upsample_bilinear(o2, 2), p1],
               'o1', jnp.float32)
    return o1


# ----------------------------------------------------------------------------
# Pure-JAX reference for the self-check (lax.conv in f32).
# ----------------------------------------------------------------------------
def _conv_bn_relu_ref(x, w_folded, bias):
    cin = x.shape[-1]
    cout = w_folded.shape[-1]
    w = w_folded.astype(jnp.float32).reshape(3, 3, cin, cout)
    y = jax.lax.conv_general_dilated(
        x.astype(jnp.float32), w, window_strides=(1, 1), padding='SAME',
        dimension_numbers=('NHWC', 'HWIO', 'NHWC'))
    return jnp.maximum(y + bias.reshape(1, 1, 1, -1).astype(jnp.float32), 0.0)


# ----------------------------------------------------------------------------
if __name__ == "__main__":
    key = jax.random.PRNGKey(0)
    kp, k1, k2, k3, k4, k5 = jax.random.split(key, 6)

    B = 2
    S = 16  # finest (p1) spatial resolution; p5 is S // 16
    p1_nchw = jax.random.normal(k1, (B, 64, S, S), jnp.float32)
    p2_nchw = jax.random.normal(k2, (B, 128, S // 2, S // 2), jnp.float32)
    p3_nchw = jax.random.normal(k3, (B, 256, S // 4, S // 4), jnp.float32)
    p4_nchw = jax.random.normal(k4, (B, 512, S // 8, S // 8), jnp.float32)
    p5_nchw = jax.random.normal(k5, (B, 512, S // 16, S // 16), jnp.float32)

    # NCHW -> NHWC for the kernels.
    to_nhwc = lambda x: jnp.transpose(x, (0, 2, 3, 1))
    features = tuple(to_nhwc(p) for p in (p1_nchw, p2_nchw, p3_nchw, p4_nchw, p5_nchw))

    params = make_fusion_params(kp, cat_channel=CAT_C)

    # Correctness self-check of the in-kernel 9-tap conv vs lax.conv (same bf16 operands).
    kc1, kc2 = jax.random.split(jax.random.PRNGKey(1))
    xc = jax.random.normal(kc1, (1, 5, 7, 64), jnp.float32).astype(jnp.bfloat16)
    wc, bc = make_convbnact_params(kc2, 64, 64)
    y_pal = jax.jit(functools.partial(conv_bn_relu_pallas, out_dtype=jnp.float32))(xc, wc, bc)
    y_ref = _conv_bn_relu_ref(xc, wc, bc)
    max_err = float(jnp.max(jnp.abs(y_pal - y_ref)))
    assert max_err < 5e-2, f"conv self-check failed: max abs err {max_err}"

    fwd = jax.jit(fusion_forward)
    out = fwd(params, features)            # NHWC: (B, S, S, 320) f32
    out = jax.block_until_ready(out)
    assert out.shape == (B, S, S, 5 * CAT_C)
    assert bool(jnp.all(jnp.isfinite(out)))
    print("KERNEL_OK")
</pallas_src>

<mosaic_0001>
module attributes {stable_mosaic.version = 11 : i64} {
  func.func @_conv_bias_relu_kernel(%arg0: i32, %arg1: memref<1x72x64xbf16, #tpu.memory_space<vmem>>, %arg2: memref<576x64xbf16, #tpu.memory_space<vmem>>, %arg3: memref<1x64xf32, #tpu.memory_space<vmem>>, %arg4: memref<1x45x64xf32, #tpu.memory_space<vmem>>) attributes {dimension_semantics = [#tpu.dimension_semantics<parallel>], iteration_bounds = array<i64: 1>, scalar_prefetch = 0 : i64, scratch_operands = 0 : i64, tpu.core_type = #tpu.core_type<tc>, window_params = [{transform_indices = @transform_0, window_bounds = array<i64: 1, 72, 64>}, {pipeline_mode = #tpu.pipeline_mode<synchronous>, transform_indices = @transform_1, window_bounds = array<i64: 576, 64>}, {pipeline_mode = #tpu.pipeline_mode<synchronous>, transform_indices = @transform_2, window_bounds = array<i64: 1, 64>}, {transform_indices = @transform_3, window_bounds = array<i64: 1, 45, 64>}]} {
    %cst = arith.constant 0.000000e+00 : f32
    %0 = vector.broadcast %cst : f32 to vector<45x64xf32>
    %c0 = arith.constant 0 : index
    %c0_0 = arith.constant 0 : index
    %c0_1 = arith.constant 0 : index
    %1 = vector.load %arg1[%c0, %c0_0, %c0_1] : memref<1x72x64xbf16, #tpu.memory_space<vmem>>, vector<1x45x64xbf16>
    %2 = vector.shape_cast %1 : vector<1x45x64xbf16> to vector<45x64xbf16>
    %c0_2 = arith.constant 0 : index
    %c0_3 = arith.constant 0 : index
    %3 = vector.load %arg2[%c0_2, %c0_3] : memref<576x64xbf16, #tpu.memory_space<vmem>>, vector<64x64xbf16>
    %cst_4 = arith.constant dense<0.000000e+00> : vector<45x64xf32>
    %4 = tpu.matmul %2, %3, %cst_4 {dimension_numbers = #tpu.dot_dimension_numbers<[1], [0], [0], [1], [0, 0, 1, 1], [], []>} : vector<45x64xbf16>, vector<64x64xbf16>, vector<45x64xf32> -> vector<45x64xf32>
    %5 = arith.addf %0, %4 : vector<45x64xf32>
    %c0_5 = arith.constant 0 : index
    %c1 = arith.constant 1 : index
    %c0_6 = arith.constant 0 : index
    %6 = vector.load %arg1[%c0_5, %c1, %c0_6] : memref<1x72x64xbf16, #tpu.memory_space<vmem>>, vector<1x45x64xbf16>
    %7 = vector.shape_cast %6 : vector<1x45x64xbf16> to vector<45x64xbf16>
    %c64 = arith.constant 64 : index
    %c0_7 = arith.constant 0 : index
    %8 = vector.load %arg2[%c64, %c0_7] : memref<576x64xbf16, #tpu.memory_space<vmem>>, vector<64x64xbf16>
    %cst_8 = arith.constant dense<0.000000e+00> : vector<45x64xf32>
    %9 = tpu.matmul %7, %8, %cst_8 {dimension_numbers = #tpu.dot_dimension_numbers<[1], [0], [0], [1], [0, 0, 1, 1], [], []>} : vector<45x64xbf16>, vector<64x64xbf16>, vector<45x64xf32> -> vector<45x64xf32>
    %10 = arith.addf %5, %9 : vector<45x64xf32>
    %c0_9 = arith.constant 0 : index
    %c2 = arith.constant 2 : index
    %c0_10 = arith.constant 0 : index
    %11 = vector.load %arg1[%c0_9, %c2, %c0_10] : memref<1x72x64xbf16, #tpu.memory_space<vmem>>, vector<1x45x64xbf16>
    %12 = vector.shape_cast %11 : vector<1x45x64xbf16> to vector<45x64xbf16>
    %c128 = arith.constant 128 : index
    %c0_11 = arith.constant 0 : index
    %13 = vector.load %arg2[%c128, %c0_11] : memref<576x64xbf16, #tpu.memory_space<vmem>>, vector<64x64xbf16>
    %cst_12 = arith.constant dense<0.000000e+00> : vector<45x64xf32>
    %14 = tpu.matmul %12, %13, %cst_12 {dimension_numbers = #tpu.dot_dimension_numbers<[1], [0], [0], [1], [0, 0, 1, 1], [], []>} : vector<45x64xbf16>, vector<64x64xbf16>, vector<45x64xf32> -> vector<45x64xf32>
    %15 = arith.addf %10, %14 : vector<45x64xf32>
    %c0_13 = arith.constant 0 : index
    %c9 = arith.constant 9 : index
    %c0_14 = arith.constant 0 : index
    %16 = vector.load %arg1[%c0_13, %c9, %c0_14] : memref<1x72x64xbf16, #tpu.memory_space<vmem>>, vector<1x45x64xbf16>
    %17 = vector.shape_cast %16 : vector<1x45x64xbf16> to vector<45x64xbf16>
    %c192 = arith.constant 192 : index
    %c0_15 = arith.constant 0 : index
    %18 = vector.load %arg2[%c192, %c0_15] : memref<576x64xbf16, #tpu.memory_space<vmem>>, vector<64x64xbf16>
    %cst_16 = arith.constant dense<0.000000e+00> : vector<45x64xf32>
    %19 = tpu.matmul %17, %18, %cst_16 {dimension_numbers = #tpu.dot_dimension_numbers<[1], [0], [0], [1], [0, 0, 1, 1], [], []>} : vector<45x64xbf16>, vector<64x64xbf16>, vector<45x64xf32> -> vector<45x64xf32>
    %20 = arith.addf %15, %19 : vector<45x64xf32>
    %c0_17 = arith.constant 0 : index
    %c10 = arith.constant 10 : index
    %c0_18 = arith.constant 0 : index
    %21 = vector.load %arg1[%c0_17, %c10, %c0_18] : memref<1x72x64xbf16, #tpu.memory_space<vmem>>, vector<1x45x64xbf16>
    %22 = vector.shape_cast %21 : vector<1x45x64xbf16> to vector<45x64xbf16>
    %c256 = arith.constant 256 : index
    %c0_19 = arith.constant 0 : index
    %23 = vector.load %arg2[%c256, %c0_19] : memref<576x64xbf16, #tpu.memory_space<vmem>>, vector<64x64xbf16>
    %cst_20 = arith.constant dense<0.000000e+00> : vector<45x64xf32>
    %24 = tpu.matmul %22, %23, %cst_20 {dimension_numbers = #tpu.dot_dimension_numbers<[1], [0], [0], [1], [0, 0, 1, 1], [], []>} : vector<45x64xbf16>, vector<64x64xbf16>, vector<45x64xf32> -> vector<45x64xf32>
    %25 = arith.addf %20, %24 : vector<45x64xf32>
    %c0_21 = arith.constant 0 : index
    %c11 = arith.constant 11 : index
    %c0_22 = arith.constant 0 : index
    %26 = vector.load %arg1[%c0_21, %c11, %c0_22] : memref<1x72x64xbf16, #tpu.memory_space<vmem>>, vector<1x45x64xbf16>
    %27 = vector.shape_cast %26 : vector<1x45x64xbf16> to vector<45x64xbf16>
    %c320 = arith.constant 320 : index
    %c0_23 = arith.constant 0 : index
    %28 = vector.load %arg2[%c320, %c0_23] : memref<576x64xbf16, #tpu.memory_space<vmem>>, vector<64x64xbf16>
    %cst_24 = arith.constant dense<0.000000e+00> : vector<45x64xf32>
    %29 = tpu.matmul %27, %28, %cst_24 {dimension_numbers = #tpu.dot_dimension_numbers<[1], [0], [0], [1], [0, 0, 1, 1], [], []>} : vector<45x64xbf16>, vector<64x64xbf16>, vector<45x64xf32> -> vector<45x64xf32>
    %30 = arith.addf %25, %29 : vector<45x64xf32>
    %c0_25 = arith.constant 0 : index
    %c18 = arith.constant 18 : index
    %c0_26 = arith.constant 0 : index
    %31 = vector.load %arg1[%c0_25, %c18, %c0_26] : memref<1x72x64xbf16, #tpu.memory_space<vmem>>, vector<1x45x64xbf16>
    %32 = vector.shape_cast %31 : vector<1x45x64xbf16> to vector<45x64xbf16>
    %c384 = arith.constant 384 : index
    %c0_27 = arith.constant 0 : index
    %33 = vector.load %arg2[%c384, %c0_27] : memref<576x64xbf16, #tpu.memory_space<vmem>>, vector<64x64xbf16>
    %cst_28 = arith.constant dense<0.000000e+00> : vector<45x64xf32>
    %34 = tpu.matmul %32, %33, %cst_28 {dimension_numbers = #tpu.dot_dimension_numbers<[1], [0], [0], [1], [0, 0, 1, 1], [], []>} : vector<45x64xbf16>, vector<64x64xbf16>, vector<45x64xf32> -> vector<45x64xf32>
    %35 = arith.addf %30, %34 : vector<45x64xf32>
    %c0_29 = arith.constant 0 : index
    %c19 = arith.constant 19 : index
    %c0_30 = arith.constant 0 : index
    %36 = vector.load %arg1[%c0_29, %c19, %c0_30] : memref<1x72x64xbf16, #tpu.memory_space<vmem>>, vector<1x45x64xbf16>
    %37 = vector.shape_cast %36 : vector<1x45x64xbf16> to vector<45x64xbf16>
    %c448 = arith.constant 448 : index
    %c0_31 = arith.constant 0 : index
    %38 = vector.load %arg2[%c448, %c0_31] : memref<576x64xbf16, #tpu.memory_space<vmem>>, vector<64x64xbf16>
    %cst_32 = arith.constant dense<0.000000e+00> : vector<45x64xf32>
    %39 = tpu.matmul %37, %38, %cst_32 {dimension_numbers = #tpu.dot_dimension_numbers<[1], [0], [0], [1], [0, 0, 1, 1], [], []>} : vector<45x64xbf16>, vector<64x64xbf16>, vector<45x64xf32> -> vector<45x64xf32>
    %40 = arith.addf %35, %39 : vector<45x64xf32>
    %c0_33 = arith.constant 0 : index
    %c20 = arith.constant 20 : index
    %c0_34 = arith.constant 0 : index
    %41 = vector.load %arg1[%c0_33, %c20, %c0_34] : memref<1x72x64xbf16, #tpu.memory_space<vmem>>, vector<1x45x64xbf16>
    %42 = vector.shape_cast %41 : vector<1x45x64xbf16> to vector<45x64xbf16>
    %c512 = arith.constant 512 : index
    %c0_35 = arith.constant 0 : index
    %43 = vector.load %arg2[%c512, %c0_35] : memref<576x64xbf16, #tpu.memory_space<vmem>>, vector<64x64xbf16>
    %cst_36 = arith.constant dense<0.000000e+00> : vector<45x64xf32>
    %44 = tpu.matmul %42, %43, %cst_36 {dimension_numbers = #tpu.dot_dimension_numbers<[1], [0], [0], [1], [0, 0, 1, 1], [], []>} : vector<45x64xbf16>, vector<64x64xbf16>, vector<45x64xf32> -> vector<45x64xf32>
    %45 = arith.addf %40, %44 : vector<45x64xf32>
    %c0_37 = arith.constant 0 : index
    %c0_38 = arith.constant 0 : index
    %46 = vector.load %arg3[%c0_37, %c0_38] : memref<1x64xf32, #tpu.memory_space<vmem>>, vector<1x64xf32>
    %47 = vector.broadcast %46 : vector<1x64xf32> to vector<45x64xf32>
    %48 = arith.addf %45, %47 : vector<45x64xf32>
    %cst_39 = arith.constant 0.000000e+00 : f32
    %49 = vector.broadcast %cst_39 : f32 to vector<45x64xf32>
    %50 = arith.maximumf %48, %49 : vector<45x64xf32>
    %c0_40 = arith.constant 0 : index
    %c0_41 = arith.constant 0 : index
    %c0_42 = arith.constant 0 : index
    %51 = vector.load %arg4[%c0_40, %c0_41, %c0_42] : memref<1x45x64xf32, #tpu.memory_space<vmem>>, vector<1x45x64xf32>
    %52 = vector.shape_cast %51 : vector<1x45x64xf32> to vector<45x64xf32>
    %53 = vector.shape_cast %50 : vector<45x64xf32> to vector<1x45x64xf32>
    tpu.vector_store %arg4[%c0_40, %c0_41, %c0_42], %53 {strides = array<i32>} : memref<1x45x64xf32, #tpu.memory_space<vmem>>, vector<1x45x64xf32>,
    return
  }
  func.func @transform_0(%arg0: i32) -> (i32, i32, i32) {
    %c0_i32 = arith.constant 0 : i32
    %c0_i32_0 = arith.constant 0 : i32
    %c0_i32_1 = arith.constant 0 : i32
    return %arg0, %c0_i32, %c0_i32_0 : i32, i32, i32
  }
  func.func @transform_1(%arg0: i32) -> (i32, i32) {
    %c0_i32 = arith.constant 0 : i32
    %c0_i32_0 = arith.constant 0 : i32
    %c0_i32_1 = arith.constant 0 : i32
    return %c0_i32, %c0_i32_0 : i32, i32
  }
  func.func @transform_2(%arg0: i32) -> (i32, i32) {
    %c0_i32 = arith.constant 0 : i32
    %c0_i32_0 = arith.constant 0 : i32
    %c0_i32_1 = arith.constant 0 : i32
    return %c0_i32, %c0_i32_0 : i32, i32
  }
  func.func @transform_3(%arg0: i32) -> (i32, i32, i32) {
    %c0_i32 = arith.constant 0 : i32
    %c0_i32_0 = arith.constant 0 : i32
    %c0_i32_1 = arith.constant 0 : i32
    return %arg0, %c0_i32, %c0_i32_0 : i32, i32, i32
  }
}

</mosaic_0001>

<llo_original>
// kernel: conv_bn_relu_pallas.1
$region0: #{conv_bn_relu_pallas.1}
  #allocation0 [shape = 'u32[]', space=smem, size = 0x4, offset = 0x4, fixed_abs, tag = 'smem constant byte address 0x4 - core index']
  #allocation1 [shape = 'u32[72,128]{1,0:T(1,128)}', space=vmem, size = 0x9000, scoped, tag = 'internal scratch']
  %s0 = inlined_call_operand.vmem [shape: bf16[1,72,64], index: 0, kind: input, shape index: {}]
  %s1 = inlined_call_operand.vmem [shape: bf16[576,64], index: 1, kind: input, shape index: {}]
  %s2 = inlined_call_operand.vmem [shape: f32[1,64], index: 2, kind: input, shape index: {}]
  %s3 = inlined_call_operand.vmem [shape: f32[1,45,64], index: 3, kind: output, shape index: {}]
  %s4 = sld [smem:[#allocation0]]
  $region22: #{conv_bn_relu_pallas.1} parent=0
    _
  %s6 = ssub.s32 1, %s4
  %s7 = scalar_select 0, %s6, %s4
  // Predicated region
  $region2: #{conv_bn_relu_pallas.1} parent=0 // pred_check
    _
  $region3: #{conv_bn_relu_pallas.1} parent=0 // pred_check_branch
    %9 = sbr.rel (0) target = $region5
  $region4: #{conv_bn_relu_pallas.1} parent=0 // pred_region
    _
  $region5: #{conv_bn_relu_pallas.1} parent=0 // pred_fallthru
    _
  // Predicated region
  $region6: #{conv_bn_relu_pallas.1} parent=0 // pred_check
    _
  $region7: #{conv_bn_relu_pallas.1} parent=0 // pred_check_branch
    %11 = sbr.rel (0) target = $region9
  $region8: #{conv_bn_relu_pallas.1} parent=0 // pred_region
    _
  $region9: #{conv_bn_relu_pallas.1} parent=0 // pred_fallthru
    _
  // Predicated region
  $region10: #{conv_bn_relu_pallas.1} parent=0 // pred_check
    _
  $region11: #{conv_bn_relu_pallas.1} parent=0 // pred_check_branch
    %13 = sbr.rel (0) target = $region13
  $region12: #{conv_bn_relu_pallas.1} parent=0 // pred_region
    _
  $region13: #{conv_bn_relu_pallas.1} parent=0 // pred_fallthru
    _
  %v15 = vld [vmem:[%s0] sm:$0xf]
  %v16 = vld [vmem:[%s0 + $0x4] sm:$0xf]
  %v17 = vld [vmem:[%s0 + $0x8] sm:$0xf]
  %v18 = vld [vmem:[%s0 + $0xc] sm:$0xf]
  %v19 = vld [vmem:[%s0 + $0x10] sm:$0xf]
  %v20 = vld [vmem:[%s0 + $0x14] sm:$0x7]
  %v21 = vld [vmem:[%s1] sm:$0xf]
  %v22 = vld [vmem:[%s1 + $0x4] sm:$0xf]
  %v23 = vld [vmem:[%s1 + $0x8] sm:$0xf]
  %v24 = vld [vmem:[%s1 + $0xc] sm:$0xf]
  %v25 = vld [vmem:[%s1 + $0x10] sm:$0xf]
  %v26 = vld [vmem:[%s1 + $0x14] sm:$0xf]
  %v27 = vld [vmem:[%s1 + $0x18] sm:$0xf]
  %v28 = vld [vmem:[%s1 + $0x1c] sm:$0xf]
  %v29 = vld [vmem:[%s1 + $0x20] sm:$0xf]
  %v30 = vld [vmem:[%s1 + $0x24] sm:$0xf]
  %v31 = vld [vmem:[%s1 + $0x28] sm:$0xf]
  %v32 = vld [vmem:[%s1 + $0x2c] sm:$0xf]
  %v33 = vld [vmem:[%s1 + $0x30] sm:$0xf]
  %v34 = vld [vmem:[%s1 + $0x34] sm:$0xf]
  %v35 = vld [vmem:[%s1 + $0x38] sm:$0xf]
  %v36 = vld [vmem:[%s1 + $0x3c] sm:$0xf]
  %v43 = vunpack.c.l.b16 %v15
  %v44 = vunpack.c.l.b16 %v16
  %v45 = vunpack.c.l.b16 %v17
  %v46 = vunpack.c.l.b16 %v18
  %v47 = vunpack.c.l.b16 %v19
  %v48 = vunpack.c.l.b16 %v20
  %v49 = vpack.c.b16 %v44, %v43
  %v50 = vpack.c.b16 %v46, %v45
  %v51 = vpack.c.b16 %v48, %v47
  %vm52 = vsmask.f32 7424
  %v54 = vshrl.u32 %v49, 16
  %v56 = vshll.u32 %v49, 16
  %v58 = vrot.slane %v56, 1
  %v59 = vor.u32 %v54, %v58
  %v61 = vshll.u32 %v50, 16
  %v63 = vrot.slane %v61, 1
  %v64 = vsel %vm52, %v59, %v63
  %v65 = vshrl.u32 %v50, 16
  %v67 = vor.u32 %v65, %v63
  %v69 = vshll.u32 %v51, 16
  %v71 = vrot.slane %v69, 1
  %v72 = vsel %vm52, %v67, %v71
  %v73 = vshrl.u32 %v51, 16
  %v75 = vor.u32 %v73, %v71
  %v84 = vunpack.c.l.b16 %v29
  %v85 = vunpack.c.l.b16 %v30
  %v86 = vunpack.c.l.b16 %v31
  %v87 = vunpack.c.l.b16 %v32
  %v88 = vunpack.c.l.b16 %v33
  %v89 = vunpack.c.l.b16 %v34
  %v90 = vunpack.c.l.b16 %v35
  %v91 = vunpack.c.l.b16 %v36
  %v92 = vpack.c.b16 %v85, %v84
  %v93 = vpack.c.b16 %v87, %v86
  %v94 = vpack.c.b16 %v89, %v88
  %v95 = vpack.c.b16 %v91, %v90
  %vm100 = vcmask 523264
  %v102 = vsel %vm100, %v64, 0
  %v105 = vsel %vm100, %v72, 0
  %v108 = vsel %vm100, %v75, 0
  %110 = vmatpush.bf16.msra.mxu0 0
  %111 = vmatpush.bf16.msra.mxu0 0
  %112 = vmatpush.bf16.msra.mxu0 0
  %113 = vmatpush.bf16.msra.mxu0 0
  %114 = vmatpush.bf16.msra.mxu0 %v95
  %115 = vmatpush.bf16.msra.mxu0 %v94
  %116 = vmatpush.bf16.msra.mxu0 %v93
  %117 = vmatpush.bf16.msra.mxu0 %v92
  %118 = vmatmul.bf16.gmra.mxu0 %v102
  %v119 = vpop.f32.mrf.mxu0
  %v120 = vadd.f32 0.0, %v119
  %v121 = vpop.f32.mrf.mxu0
  %v122 = vadd.f32 0.0, %v121
  %123 = vmatmul.bf16.gmra.mxu0 %v105
  %v124 = vpop.f32.mrf.mxu0
  %v125 = vadd.f32 0.0, %v124
  %v126 = vpop.f32.mrf.mxu0
  %v127 = vadd.f32 0.0, %v126
  %128 = vmatmul.bf16.gmra.mxu0 %v108
  %v129 = vpop.f32.mrf.mxu0
  %v130 = vadd.f32 0.0, %v129
  %v131 = vpop.f32.mrf.mxu0
  %v132 = vadd.f32 0.0, %v131
  %133 = vdwg.mxu0
  %v142 = vunpack.c.l.b16 %v21
  %v143 = vunpack.c.l.b16 %v22
  %v144 = vunpack.c.l.b16 %v23
  %v145 = vunpack.c.l.b16 %v24
  %v146 = vunpack.c.l.b16 %v25
  %v147 = vunpack.c.l.b16 %v26
  %v148 = vunpack.c.l.b16 %v27
  %v149 = vunpack.c.l.b16 %v28
  %v150 = vpack.c.b16 %v143, %v142
  %v151 = vpack.c.b16 %v145, %v144
  %v152 = vpack.c.b16 %v147, %v146
  %v153 = vpack.c.b16 %v149, %v148
  %v158 = vsel %vm100, %v49, 0
  %v160 = vsel %vm100, %v50, 0
  %v162 = vsel %vm100, %v51, 0
  %164 = vmatpush.bf16.msra.mxu0 0
  %165 = vmatpush.bf16.msra.mxu0 0
  %166 = vmatpush.bf16.msra.mxu0 0
  %167 = vmatpush.bf16.msra.mxu0 0
  %168 = vmatpush.bf16.msra.mxu0 %v153
  %169 = vmatpush.bf16.msra.mxu0 %v152
  %170 = vmatpush.bf16.msra.mxu0 %v151
  %171 = vmatpush.bf16.msra.mxu0 %v150
  %172 = vmatmul.bf16.gmra.mxu0 %v158
  %v173 = vpop.f32.mrf.mxu0
  %v174 = vadd.f32 %v120, %v173
  %v175 = vpop.f32.mrf.mxu0
  %v176 = vadd.f32 %v122, %v175
  %177 = vmatmul.bf16.gmra.mxu0 %v160
  %v178 = vpop.f32.mrf.mxu0
  %v179 = vadd.f32 %v125, %v178
  %v180 = vpop.f32.mrf.mxu0
  %v181 = vadd.f32 %v127, %v180
  %182 = vmatmul.bf16.gmra.mxu0 %v162
  %v183 = vpop.f32.mrf.mxu0
  %v184 = vadd.f32 %v130, %v183
  %v185 = vpop.f32.mrf.mxu0
  %v186 = vadd.f32 %v132, %v185
  %187 = vdwg.mxu0
  %v188 = vld [vmem:[%s0] sm:$0xe]
  %v189 = vld [vmem:[%s0 + $0x14] sm:$0xf]
  %v190 = vld [vmem:[%s1 + $0x40] sm:$0xf]
  %v191 = vld [vmem:[%s1 + $0x44] sm:$0xf]
  %v192 = vld [vmem:[%s1 + $0x48] sm:$0xf]
  %v193 = vld [vmem:[%s1 + $0x4c] sm:$0xf]
  %v194 = vld [vmem:[%s1 + $0x50] sm:$0xf]
  %v195 = vld [vmem:[%s1 + $0x54] sm:$0xf]
  %v196 = vld [vmem:[%s1 + $0x58] sm:$0xf]
  %v197 = vld [vmem:[%s1 + $0x5c] sm:$0xf]
  %v200 = vunpack.c.l.b16 %v188
  %v201 = vunpack.c.l.b16 %v189
  %v202 = vpack.c.b16 %v44, %v200
  %v203 = vpack.c.b16 %v201, %v47
  %vm204 = vcmask 1046528
  %v205 = vrot.slane %v202, 1
  %v206 = vrot.slane %v50, 1
  %v207 = vsel %vm204, %v205, %v206
  %v208 = vrot.slane %v203, 1
  %v209 = vsel %vm204, %v206, %v208
  %v218 = vunpack.c.l.b16 %v190
  %v219 = vunpack.c.l.b16 %v191
  %v220 = vunpack.c.l.b16 %v192
  %v221 = vunpack.c.l.b16 %v193
  %v222 = vunpack.c.l.b16 %v194
  %v223 = vunpack.c.l.b16 %v195
  %v224 = vunpack.c.l.b16 %v196
  %v225 = vunpack.c.l.b16 %v197
  %v226 = vpack.c.b16 %v219, %v218
  %v227 = vpack.c.b16 %v221, %v220
  %v228 = vpack.c.b16 %v223, %v222
  %v229 = vpack.c.b16 %v225, %v224
  %v235 = vsel %vm100, %v207, 0
  %v238 = vsel %vm100, %v209, 0
  %v241 = vsel %vm100, %v208, 0
  %243 = vmatpush.bf16.msra.mxu0 0
  %244 = vmatpush.bf16.msra.mxu0 0
  %245 = vmatpush.bf16.msra.mxu0 0
  %246 = vmatpush.bf16.msra.mxu0 0
  %247 = vmatpush.bf16.msra.mxu0 %v229
  %248 = vmatpush.bf16.msra.mxu0 %v228
  %249 = vmatpush.bf16.msra.mxu0 %v227
  %250 = vmatpush.bf16.msra.mxu0 %v226
  %251 = vmatmul.bf16.gmra.mxu0 %v235
  %v252 = vpop.f32.mrf.mxu0
  %v253 = vadd.f32 0.0, %v252
  %v254 = vpop.f32.mrf.mxu0
  %v255 = vadd.f32 0.0, %v254
  %256 = vmatmul.bf16.gmra.mxu0 %v238
  %v257 = vpop.f32.mrf.mxu0
  %v258 = vadd.f32 0.0, %v257
  %v259 = vpop.f32.mrf.mxu0
  %v260 = vadd.f32 0.0, %v259
  %261 = vmatmul.bf16.gmra.mxu0 %v241
  %v262 = vpop.f32.mrf.mxu0
  %v263 = vadd.f32 0.0, %v262
  %v264 = vpop.f32.mrf.mxu0
  %v265 = vadd.f32 0.0, %v264
  %266 = vdwg.mxu0
  %v267 = vadd.f32 %v174, %v253
  %v268 = vadd.f32 %v176, %v255
  %v269 = vadd.f32 %v179, %v258
  %v270 = vadd.f32 %v181, %v260
  %v271 = vadd.f32 %v184, %v263
  %v272 = vadd.f32 %v186, %v265
  %v273 = vld [vmem:[%s0 + $0x4] sm:$0xf]
  %v274 = vld [vmem:[%s0 + $0x8] sm:$0xf]
  %v275 = vld [vmem:[%s0 + $0xc] sm:$0xf]
  %v276 = vld [vmem:[%s0 + $0x10] sm:$0xf]
  %v277 = vld [vmem:[%s0 + $0x14] sm:$0xf]
  %v278 = vld [vmem:[%s0 + $0x18] sm:$0x7]
  %v279 = vld [vmem:[%s1 + $0x60] sm:$0xf]
  %v280 = vld [vmem:[%s1 + $0x64] sm:$0xf]
  %v281 = vld [vmem:[%s1 + $0x68] sm:$0xf]
  %v282 = vld [vmem:[%s1 + $0x6c] sm:$0xf]
  %v283 = vld [vmem:[%s1 + $0x70] sm:$0xf]
  %v284 = vld [vmem:[%s1 + $0x74] sm:$0xf]
  %v285 = vld [vmem:[%s1 + $0x78] sm:$0xf]
  %v286 = vld [vmem:[%s1 + $0x7c] sm:$0xf]
  %v293 = vunpack.c.l.b16 %v273
  %v294 = vunpack.c.l.b16 %v274
  %v295 = vunpack.c.l.b16 %v275
  %v296 = vunpack.c.l.b16 %v276
  %v297 = vunpack.c.l.b16 %v277
  %v298 = vunpack.c.l.b16 %v278
  %v299 = vpack.c.b16 %v294, %v293
  %v300 = vpack.c.b16 %v296, %v295
  %v301 = vpack.c.b16 %v298, %v297
  %v303 = vshrl.u32 %v299, 16
  %v305 = vshll.u32 %v299, 16
  %v307 = vrot.slane %v305, 1
  %v308 = vor.u32 %v303, %v307
  %v310 = vshll.u32 %v300, 16
  %v312 = vrot.slane %v310, 1
  %v313 = vsel %vm52, %v308, %v312
  %v314 = vshrl.u32 %v300, 16
  %v316 = vor.u32 %v314, %v312
  %v318 = vshll.u32 %v301, 16
  %v320 = vrot.slane %v318, 1
  %v321 = vsel %vm52, %v316, %v320
  %v322 = vshrl.u32 %v301, 16
  %v324 = vor.u32 %v322, %v320
  %v333 = vunpack.c.l.b16 %v279
  %v334 = vunpack.c.l.b16 %v280
  %v335 = vunpack.c.l.b16 %v281
  %v336 = vunpack.c.l.b16 %v282
  %v337 = vunpack.c.l.b16 %v283
  %v338 = vunpack.c.l.b16 %v284
  %v339 = vunpack.c.l.b16 %v285
  %v340 = vunpack.c.l.b16 %v286
  %v341 = vpack.c.b16 %v334, %v333
  %v342 = vpack.c.b16 %v336, %v335
  %v343 = vpack.c.b16 %v338, %v337
  %v344 = vpack.c.b16 %v340, %v339
  %v350 = vsel %vm100, %v313, 0
  %v353 = vsel %vm100, %v321, 0
  %v356 = vsel %vm100, %v324, 0
  %358 = vmatpush.bf16.msra.mxu0 0
  %359 = vmatpush.bf16.msra.mxu0 0
  %360 = vmatpush.bf16.msra.mxu0 0
  %361 = vmatpush.bf16.msra.mxu0 0
  %362 = vmatpush.bf16.msra.mxu0 %v344
  %363 = vmatpush.bf16.msra.mxu0 %v343
  %364 = vmatpush.bf16.msra.mxu0 %v342
  %365 = vmatpush.bf16.msra.mxu0 %v341
  %366 = vmatmul.bf16.gmra.mxu0 %v350
  %v367 = vpop.f32.mrf.mxu0
  %v368 = vadd.f32 0.0, %v367
  %v369 = vpop.f32.mrf.mxu0
  %v370 = vadd.f32 0.0, %v369
  %371 = vmatmul.bf16.gmra.mxu0 %v353
  %v372 = vpop.f32.mrf.mxu0
  %v373 = vadd.f32 0.0, %v372
  %v374 = vpop.f32.mrf.mxu0
  %v375 = vadd.f32 0.0, %v374
  %376 = vmatmul.bf16.gmra.mxu0 %v356
  %v377 = vpop.f32.mrf.mxu0
  %v378 = vadd.f32 0.0, %v377
  %v379 = vpop.f32.mrf.mxu0
  %v380 = vadd.f32 0.0, %v379
  %381 = vdwg.mxu0
  %v382 = vadd.f32 %v267, %v368
  %v383 = vadd.f32 %v268, %v370
  %v384 = vadd.f32 %v269, %v373
  %v385 = vadd.f32 %v270, %v375
  %v386 = vadd.f32 %v271, %v378
  %v387 = vadd.f32 %v272, %v380
  %v388 = vld [vmem:[%s0 + $0x4] sm:$0xe]
  %v389 = vld [vmem:[%s0 + $0x18] sm:$0xf]
  %v390 = vld [vmem:[%s1 + $0x80] sm:$0xf]
  %v391 = vld [vmem:[%s1 + $0x84] sm:$0xf]
  %v392 = vld [vmem:[%s1 + $0x88] sm:$0xf]
  %v393 = vld [vmem:[%s1 + $0x8c] sm:$0xf]
  %v394 = vld [vmem:[%s1 + $0x90] sm:$0xf]
  %v395 = vld [vmem:[%s1 + $0x94] sm:$0xf]
  %v396 = vld [vmem:[%s1 + $0x98] sm:$0xf]
  %v397 = vld [vmem:[%s1 + $0x9c] sm:$0xf]
  %v400 = vunpack.c.l.b16 %v388
  %v401 = vunpack.c.l.b16 %v389
  %v402 = vpack.c.b16 %v294, %v400
  %v403 = vpack.c.b16 %v401, %v297
  %v404 = vrot.slane %v402, 1
  %v405 = vrot.slane %v300, 1
  %v406 = vsel %vm204, %v404, %v405
  %v407 = vrot.slane %v403, 1
  %v408 = vsel %vm204, %v405, %v407
  %v417 = vunpack.c.l.b16 %v390
  %v418 = vunpack.c.l.b16 %v391
  %v419 = vunpack.c.l.b16 %v392
  %v420 = vunpack.c.l.b16 %v393
  %v421 = vunpack.c.l.b16 %v394
  %v422 = vunpack.c.l.b16 %v395
  %v423 = vunpack.c.l.b16 %v396
  %v424 = vunpack.c.l.b16 %v397
  %v425 = vpack.c.b16 %v418, %v417
  %v426 = vpack.c.b16 %v420, %v419
  %v427 = vpack.c.b16 %v422, %v421
  %v428 = vpack.c.b16 %v424, %v423
  %v434 = vsel %vm100, %v406, 0
  %v437 = vsel %vm100, %v408, 0
  %v440 = vsel %vm100, %v407, 0
  %442 = vmatpush.bf16.msra.mxu0 0
  %443 = vmatpush.bf16.msra.mxu0 0
  %444 = vmatpush.bf16.msra.mxu0 0
  %445 = vmatpush.bf16.msra.mxu0 0
  %446 = vmatpush.bf16.msra.mxu0 %v428
  %447 = vmatpush.bf16.msra.mxu0 %v427
  %448 = vmatpush.bf16.msra.mxu0 %v426
  %449 = vmatpush.bf16.msra.mxu0 %v425
  %450 = vmatmul.bf16.gmra.mxu0 %v434
  %v451 = vpop.f32.mrf.mxu0
  %v452 = vadd.f32 0.0, %v451
  %v453 = vpop.f32.mrf.mxu0
  %v454 = vadd.f32 0.0, %v453
  %455 = vmatmul.bf16.gmra.mxu0 %v437
  %v456 = vpop.f32.mrf.mxu0
  %v457 = vadd.f32 0.0, %v456
  %v458 = vpop.f32.mrf.mxu0
  %v459 = vadd.f32 0.0, %v458
  %460 = vmatmul.bf16.gmra.mxu0 %v440
  %v461 = vpop.f32.mrf.mxu0
  %v462 = vadd.f32 0.0, %v461
  %v463 = vpop.f32.mrf.mxu0
  %v464 = vadd.f32 0.0, %v463
  %465 = vdwg.mxu0
  %v466 = vadd.f32 %v382, %v452
  %v467 = vadd.f32 %v383, %v454
  %v468 = vadd.f32 %v384, %v457
  %v469 = vadd.f32 %v385, %v459
  %v470 = vadd.f32 %v386, %v462
  %v471 = vadd.f32 %v387, %v464
  %v472 = vld [vmem:[%s1 + $0xa0] sm:$0xf]
  %v473 = vld [vmem:[%s1 + $0xa4] sm:$0xf]
  %v474 = vld [vmem:[%s1 + $0xa8] sm:$0xf]
  %v475 = vld [vmem:[%s1 + $0xac] sm:$0xf]
  %v476 = vld [vmem:[%s1 + $0xb0] sm:$0xf]
  %v477 = vld [vmem:[%s1 + $0xb4] sm:$0xf]
  %v478 = vld [vmem:[%s1 + $0xb8] sm:$0xf]
  %v479 = vld [vmem:[%s1 + $0xbc] sm:$0xf]
  %vm480 = vsmask.f32 6400
  %v482 = vshrl.u32 %v402, 16
  %v484 = vrot.slane %v482, 1
  %v485 = vshll.u32 %v402, 16
  %v487 = vrot.slane %v485, 2
  %v488 = vor.u32 %v484, %v487
  %v489 = vrot.slane %v314, 1
  %v490 = vrot.slane %v310, 2
  %v491 = vor.u32 %v489, %v490
  %v492 = vsel %vm480, %v488, %v491
  %v494 = vshrl.u32 %v403, 16
  %v496 = vrot.slane %v494, 1
  %v497 = vshll.u32 %v403, 16
  %v499 = vrot.slane %v497, 2
  %v500 = vor.u32 %v496, %v499
  %v501 = vsel %vm480, %v491, %v500
  %v510 = vunpack.c.l.b16 %v472
  %v511 = vunpack.c.l.b16 %v473
  %v512 = vunpack.c.l.b16 %v474
  %v513 = vunpack.c.l.b16 %v475
  %v514 = vunpack.c.l.b16 %v476
  %v515 = vunpack.c.l.b16 %v477
  %v516 = vunpack.c.l.b16 %v478
  %v517 = vunpack.c.l.b16 %v479
  %v518 = vpack.c.b16 %v511, %v510
  %v519 = vpack.c.b16 %v513, %v512
  %v520 = vpack.c.b16 %v515, %v514
  %v521 = vpack.c.b16 %v517, %v516
  %v527 = vsel %vm100, %v492, 0
  %v530 = vsel %vm100, %v501, 0
  %v533 = vsel %vm100, %v500, 0
  %535 = vmatpush.bf16.msra.mxu0 0
  %536 = vmatpush.bf16.msra.mxu0 0
  %537 = vmatpush.bf16.msra.mxu0 0
  %538 = vmatpush.bf16.msra.mxu0 0
  %539 = vmatpush.bf16.msra.mxu0 %v521
  %540 = vmatpush.bf16.msra.mxu0 %v520
  %541 = vmatpush.bf16.msra.mxu0 %v519
  %542 = vmatpush.bf16.msra.mxu0 %v518
  %543 = vmatmul.bf16.gmra.mxu0 %v527
  %v544 = vpop.f32.mrf.mxu0
  %v545 = vadd.f32 0.0, %v544
  %v546 = vpop.f32.mrf.mxu0
  %v547 = vadd.f32 0.0, %v546
  %548 = vmatmul.bf16.gmra.mxu0 %v530
  %v549 = vpop.f32.mrf.mxu0
  %v550 = vadd.f32 0.0, %v549
  %v551 = vpop.f32.mrf.mxu0
  %v552 = vadd.f32 0.0, %v551
  %553 = vmatmul.bf16.gmra.mxu0 %v533
  %v554 = vpop.f32.mrf.mxu0
  %v555 = vadd.f32 0.0, %v554
  %v556 = vpop.f32.mrf.mxu0
  %v557 = vadd.f32 0.0, %v556
  %558 = vdwg.mxu0
  %v559 = vadd.f32 %v466, %v545
  %v560 = vadd.f32 %v467, %v547
  %v561 = vadd.f32 %v468, %v550
  %v562 = vadd.f32 %v469, %v552
  %v563 = vadd.f32 %v470, %v555
  %v564 = vadd.f32 %v471, %v557
  %v565 = vld [vmem:[%s0 + $0x8] sm:$0xe]
  %v566 = vld [vmem:[%s0 + $0xc] sm:$0xf]
  %v567 = vld [vmem:[%s0 + $0x10] sm:$0xf]
  %v568 = vld [vmem:[%s0 + $0x14] sm:$0xf]
  %v569 = vld [vmem:[%s0 + $0x18] sm:$0xf]
  %v570 = vld [vmem:[%s0 + $0x1c] sm:$0xf]
  %v571 = vld [vmem:[%s1 + $0xc0] sm:$0xf]
  %v572 = vld [vmem:[%s1 + $0xc4] sm:$0xf]
  %v573 = vld [vmem:[%s1 + $0xc8] sm:$0xf]
  %v574 = vld [vmem:[%s1 + $0xcc] sm:$0xf]
  %v575 = vld [vmem:[%s1 + $0xd0] sm:$0xf]
  %v576 = vld [vmem:[%s1 + $0xd4] sm:$0xf]
  %v577 = vld [vmem:[%s1 + $0xd8] sm:$0xf]
  %v578 = vld [vmem:[%s1 + $0xdc] sm:$0xf]
  %v585 = vunpack.c.l.b16 %v565
  %v586 = vunpack.c.l.b16 %v566
  %v587 = vunpack.c.l.b16 %v567
  %v588 = vunpack.c.l.b16 %v568
  %v589 = vunpack.c.l.b16 %v569
  %v590 = vunpack.c.l.b16 %v570
  %v591 = vpack.c.b16 %v586, %v585
  %v592 = vpack.c.b16 %v588, %v587
  %v593 = vpack.c.b16 %v590, %v589
  %v594 = vrot.slane %v591, 1
  %v595 = vrot.slane %v592, 1
  %v596 = vsel %vm204, %v594, %v595
  %v597 = vrot.slane %v593, 1
  %v598 = vsel %vm204, %v595, %v597
  %v607 = vunpack.c.l.b16 %v571
  %v608 = vunpack.c.l.b16 %v572
  %v609 = vunpack.c.l.b16 %v573
  %v610 = vunpack.c.l.b16 %v574
  %v611 = vunpack.c.l.b16 %v575
  %v612 = vunpack.c.l.b16 %v576
  %v613 = vunpack.c.l.b16 %v577
  %v614 = vunpack.c.l.b16 %v578
  %v615 = vpack.c.b16 %v608, %v607
  %v616 = vpack.c.b16 %v610, %v609
  %v617 = vpack.c.b16 %v612, %v611
  %v618 = vpack.c.b16 %v614, %v613
  %v624 = vsel %vm100, %v596, 0
  %v627 = vsel %vm100, %v598, 0
  %v630 = vsel %vm100, %v597, 0
  %632 = vmatpush.bf16.msra.mxu0 0
  %633 = vmatpush.bf16.msra.mxu0 0
  %634 = vmatpush.bf16.msra.mxu0 0
  %635 = vmatpush.bf16.msra.mxu0 0
  %636 = vmatpush.bf16.msra.mxu0 %v618
  %637 = vmatpush.bf16.msra.mxu0 %v617
  %638 = vmatpush.bf16.msra.mxu0 %v616
  %639 = vmatpush.bf16.msra.mxu0 %v615
  %640 = vmatmul.bf16.gmra.mxu0 %v624
  %v641 = vpop.f32.mrf.mxu0
  %v642 = vadd.f32 0.0, %v641
  %v643 = vpop.f32.mrf.mxu0
  %v644 = vadd.f32 0.0, %v643
  %645 = vmatmul.bf16.gmra.mxu0 %v627
  %v646 = vpop.f32.mrf.mxu0
  %v647 = vadd.f32 0.0, %v646
  %v648 = vpop.f32.mrf.mxu0
  %v649 = vadd.f32 0.0, %v648
  %650 = vmatmul.bf16.gmra.mxu0 %v630
  %v651 = vpop.f32.mrf.mxu0
  %v652 = vadd.f32 0.0, %v651
  %v653 = vpop.f32.mrf.mxu0
  %v654 = vadd.f32 0.0, %v653
  %655 = vdwg.mxu0
  %v656 = vadd.f32 %v559, %v642
  %v657 = vadd.f32 %v560, %v644
  %v658 = vadd.f32 %v561, %v647
  %v659 = vadd.f32 %v562, %v649
  %v660 = vadd.f32 %v563, %v652
  %v661 = vadd.f32 %v564, %v654
  %v662 = vld [vmem:[%s1 + $0xe0] sm:$0xf]
  %v663 = vld [vmem:[%s1 + $0xe4] sm:$0xf]
  %v664 = vld [vmem:[%s1 + $0xe8] sm:$0xf]
  %v665 = vld [vmem:[%s1 + $0xec] sm:$0xf]
  %v666 = vld [vmem:[%s1 + $0xf0] sm:$0xf]
  %v667 = vld [vmem:[%s1 + $0xf4] sm:$0xf]
  %v668 = vld [vmem:[%s1 + $0xf8] sm:$0xf]
  %v669 = vld [vmem:[%s1 + $0xfc] sm:$0xf]
  %v671 = vshrl.u32 %v591, 16
  %v673 = vrot.slane %v671, 1
  %v674 = vshll.u32 %v591, 16
  %v676 = vrot.slane %v674, 2
  %v677 = vor.u32 %v673, %v676
  %v679 = vshrl.u32 %v592, 16
  %v681 = vrot.slane %v679, 1
  %v682 = vshll.u32 %v592, 16
  %v684 = vrot.slane %v682, 2
  %v685 = vor.u32 %v681, %v684
  %v686 = vsel %vm480, %v677, %v685
  %v688 = vshrl.u32 %v593, 16
  %v690 = vrot.slane %v688, 1
  %v691 = vshll.u32 %v593, 16
  %v693 = vrot.slane %v691, 2
  %v694 = vor.u32 %v690, %v693
  %v695 = vsel %vm480, %v685, %v694
  %v704 = vunpack.c.l.b16 %v662
  %v705 = vunpack.c.l.b16 %v663
  %v706 = vunpack.c.l.b16 %v664
  %v707 = vunpack.c.l.b16 %v665
  %v708 = vunpack.c.l.b16 %v666
  %v709 = vunpack.c.l.b16 %v667
  %v710 = vunpack.c.l.b16 %v668
  %v711 = vunpack.c.l.b16 %v669
  %v712 = vpack.c.b16 %v705, %v704
  %v713 = vpack.c.b16 %v707, %v706
  %v714 = vpack.c.b16 %v709, %v708
  %v715 = vpack.c.b16 %v711, %v710
  %v721 = vsel %vm100, %v686, 0
  %v724 = vsel %vm100, %v695, 0
  %v727 = vsel %vm100, %v694, 0
  %729 = vmatpush.bf16.msra.mxu0 0
  %730 = vmatpush.bf16.msra.mxu0 0
  %731 = vmatpush.bf16.msra.mxu0 0
  %732 = vmatpush.bf16.msra.mxu0 0
  %733 = vmatpush.bf16.msra.mxu0 %v715
  %734 = vmatpush.bf16.msra.mxu0 %v714
  %735 = vmatpush.bf16.msra.mxu0 %v713
  %736 = vmatpush.bf16.msra.mxu0 %v712
  %737 = vmatmul.bf16.gmra.mxu0 %v721
  %v738 = vpop.f32.mrf.mxu0
  %v739 = vadd.f32 0.0, %v738
  %v740 = vpop.f32.mrf.mxu0
  %v741 = vadd.f32 0.0, %v740
  %742 = vmatmul.bf16.gmra.mxu0 %v724
  %v743 = vpop.f32.mrf.mxu0
  %v744 = vadd.f32 0.0, %v743
  %v745 = vpop.f32.mrf.mxu0
  %v746 = vadd.f32 0.0, %v745
  %747 = vmatmul.bf16.gmra.mxu0 %v727
  %v748 = vpop.f32.mrf.mxu0
  %v749 = vadd.f32 0.0, %v748
  %v750 = vpop.f32.mrf.mxu0
  %v751 = vadd.f32 0.0, %v750
  %752 = vdwg.mxu0
  %v753 = vadd.f32 %v656, %v739
  %v754 = vadd.f32 %v657, %v741
  %v755 = vadd.f32 %v658, %v744
  %v756 = vadd.f32 %v659, %v746
  %v757 = vadd.f32 %v660, %v749
  %v758 = vadd.f32 %v661, %v751
  %v759 = vld [vmem:[%s0 + $0x8] sm:$0xc]
  %v760 = vld [vmem:[%s0 + $0xc] sm:$0xf]
  %v761 = vld [vmem:[%s0 + $0x10] sm:$0xf]
  %v762 = vld [vmem:[%s0 + $0x14] sm:$0xf]
  %v763 = vld [vmem:[%s0 + $0x18] sm:$0xf]
  %v764 = vld [vmem:[%s0 + $0x1c] sm:$0xf]
  %v765 = vld [vmem:[%s0 + $0x20] sm:$0x1]
  %v766 = vld [vmem:[%s1 + $0x100] sm:$0xf]
  %v767 = vld [vmem:[%s1 + $0x104] sm:$0xf]
  %v768 = vld [vmem:[%s1 + $0x108] sm:$0xf]
  %v769 = vld [vmem:[%s1 + $0x10c] sm:$0xf]
  %v770 = vld [vmem:[%s1 + $0x110] sm:$0xf]
  %v771 = vld [vmem:[%s1 + $0x114] sm:$0xf]
  %v772 = vld [vmem:[%s1 + $0x118] sm:$0xf]
  %v773 = vld [vmem:[%s1 + $0x11c] sm:$0xf]
  %v781 = vunpack.c.l.b16 %v759
  %v782 = vunpack.c.l.b16 %v760
  %v783 = vunpack.c.l.b16 %v761
  %v784 = vunpack.c.l.b16 %v762
  %v785 = vunpack.c.l.b16 %v763
  %v786 = vunpack.c.l.b16 %v764
  %v787 = vunpack.c.l.b16 %v765
  %v788 = vpack.c.b16 %v782, %v781
  %v789 = vpack.c.b16 %v784, %v783
  %v790 = vpack.c.b16 %v786, %v785
  %v791 = vpack.c.b16 %v787, %v787
  %vm792 = vcmask 1045504
  %v793 = vrot.slane %v788, 2
  %v794 = vrot.slane %v789, 2
  %v795 = vsel %vm792, %v793, %v794
  %v796 = vrot.slane %v790, 2
  %v797 = vsel %vm792, %v794, %v796
  %v798 = vrot.slane %v791, 2
  %v799 = vsel %vm792, %v796, %v798
  %v808 = vunpack.c.l.b16 %v766
  %v809 = vunpack.c.l.b16 %v767
  %v810 = vunpack.c.l.b16 %v768
  %v811 = vunpack.c.l.b16 %v769
  %v812 = vunpack.c.l.b16 %v770
  %v813 = vunpack.c.l.b16 %v771
  %v814 = vunpack.c.l.b16 %v772
  %v815 = vunpack.c.l.b16 %v773
  %v816 = vpack.c.b16 %v809, %v808
  %v817 = vpack.c.b16 %v811, %v810
  %v818 = vpack.c.b16 %v813, %v812
  %v819 = vpack.c.b16 %v815, %v814
  %v825 = vsel %vm100, %v795, 0
  %v828 = vsel %vm100, %v797, 0
  %v831 = vsel %vm100, %v799, 0
  %833 = vmatpush.bf16.msra.mxu0 0
  %834 = vmatpush.bf16.msra.mxu0 0
  %835 = vmatpush.bf16.msra.mxu0 0
  %836 = vmatpush.bf16.msra.mxu0 0
  %837 = vmatpush.bf16.msra.mxu0 %v819
  %838 = vmatpush.bf16.msra.mxu0 %v818
  %839 = vmatpush.bf16.msra.mxu0 %v817
  %840 = vmatpush.bf16.msra.mxu0 %v816
  %841 = vmatmul.bf16.gmra.mxu0 %v825
  %v842 = vpop.f32.mrf.mxu0
  %v843 = vadd.f32 0.0, %v842
  %v844 = vpop.f32.mrf.mxu0
  %v845 = vadd.f32 0.0, %v844
  %846 = vmatmul.bf16.gmra.mxu0 %v828
  %v847 = vpop.f32.mrf.mxu0
  %v848 = vadd.f32 0.0, %v847
  %v849 = vpop.f32.mrf.mxu0
  %v850 = vadd.f32 0.0, %v849
  %851 = vmatmul.bf16.gmra.mxu0 %v831
  %v852 = vpop.f32.mrf.mxu0
  %v853 = vadd.f32 0.0, %v852
  %v854 = vpop.f32.mrf.mxu0
  %v855 = vadd.f32 0.0, %v854
  %856 = vdwg.mxu0
  %v857 = vadd.f32 %v753, %v843
  %v858 = vadd.f32 %v754, %v845
  %v859 = vadd.f32 %v755, %v848
  %v860 = vadd.f32 %v756, %v850
  %v861 = vadd.f32 %v757, %v853
  %v862 = vadd.f32 %v758, %v855
  %v863 = vld [vmem:[%s2] sm:$0x1]
  %v865 = vperm.slane %v863, 0
  %v867 = vadd.f32 %v857, %v865
  %v868 = vadd.f32 %v858, %v865
  %v869 = vadd.f32 %v859, %v865
  %v870 = vadd.f32 %v860, %v865
  %v871 = vadd.f32 %v861, %v865
  %v872 = vadd.f32 %v862, %v865
  %v873 = vmax.f32 %v867, 0.0
  %v874 = vmax.f32 %v868, 0.0
  %v875 = vmax.f32 %v869, 0.0
  %v876 = vmax.f32 %v870, 0.0
  %v877 = vmax.f32 %v871, 0.0
  %v878 = vmax.f32 %v872, 0.0
  %879 = vst.msk [vmem:[%s3] sm:$0xff] %vm100, %v873
  %880 = vst.msk [vmem:[%s3 + $0x8] sm:$0xff] %vm100, %v874
  %881 = vst.msk [vmem:[%s3 + $0x10] sm:$0xff] %vm100, %v875
  %882 = vst.msk [vmem:[%s3 + $0x18] sm:$0xff] %vm100, %v876
  %883 = vst.msk [vmem:[%s3 + $0x20] sm:$0xff] %vm100, %v877
  %vm884 = vcmask 520192
  %885 = vst.msk [vmem:[%s3 + $0x28] sm:$0x1f] %vm884, %v878
  // Predicated region
  $region14: #{conv_bn_relu_pallas.1} parent=0 // pred_check
    _
  $region15: #{conv_bn_relu_pallas.1} parent=0 // pred_check_branch
    %887 = sbr.rel (0) target = $region17
  $region16: #{conv_bn_relu_pallas.1} parent=0 // pred_region
    _
  $region17: #{conv_bn_relu_pallas.1} parent=0 // pred_fallthru
    _
  // Predicated region
  $region18: #{conv_bn_relu_pallas.1} parent=0 // pred_check
    _
  $region19: #{conv_bn_relu_pallas.1} parent=0 // pred_check_branch
    %889 = sbr.rel (0) target = $region21
  $region20: #{conv_bn_relu_pallas.1} parent=0 // pred_region
    _
  $region21: #{conv_bn_relu_pallas.1} parent=0 // pred_fallthru
    _

</llo_original>
